<compile_context>
chip_gen: v7x
topology: tpu7x:2x2x1
jax: 0.10.0
libtpu: 0.0.40
codegen_flags: <defaults>
</compile_context>

<pallas_src>
import functools

import jax
import jax.numpy as jnp
from jax.experimental import pallas as pl
from jax.experimental.pallas import tpu as pltpu


def _num_tensorcores():
    """Best-effort TensorCore count per chip (2 on v7x, 1 on v5e/v6e)."""
    try:
        info = pltpu.get_tpu_info()
        for attr in ("num_cores", "core_count", "num_tensorcores",
                     "tensorcore_count", "cores_per_chip"):
            v = getattr(info, attr, None)
            if isinstance(v, int) and 1 <= v <= 16:
                return v
    except Exception:
        pass
    return 1  # safe fallback: single-core behaviour is always correct


def _vmem_limit_bytes():
    """Scoped VMEM budget: <= half of physical VMEM (v7x has only 64 MiB/TC)."""
    cap = 64 * 1024 * 1024  # conservative fallback if detection fails
    try:
        v = getattr(pltpu.get_tpu_info(), "vmem_capacity_bytes", None)
        if isinstance(v, int) and v > 0:
            cap = v
    except Exception:
        pass
    return min(64 * 1024 * 1024, cap // 2)


def _pick_block_rows(in_itemsize, vmem_limit_bytes):
    """Dtype-adaptive tile rows. Budget ~3/4 of scoped VMEM for
    2 inputs x 2 pipeline buffers (input dtype) + ~4 block-sized f32
    intermediates (upcasts/diff/err; Mosaic reuses them, this is conservative).
    """
    budget = (3 * vmem_limit_bytes) // 4
    per_row = 2 * 2 * 128 * in_itemsize + 4 * 128 * 4
    return max(8, (min(budget // per_row, 16384) // 8) * 8)


def _charbonnier_kernel(x_ref, t_ref, out_ref, *, eps, n, block_rows, acc_rows,
                        blocks_per_part, num_blocks, need_mask):
    i = pl.program_id(1)  # reduction axis (sequential within a partition)

    @pl.when(i == 0)
    def _init():
        out_ref[...] = jnp.zeros_like(out_ref)

    diff = t_ref[...].astype(jnp.float32) - x_ref[...].astype(jnp.float32)
    err = jnp.sqrt(diff * diff + jnp.float32(eps * eps))

    def _accumulate(e):
        # acc_rows (up to 64) independent sublane-rows of partial sums: keeps
        # several add chains in flight instead of one serial (8,128) chain.
        psum = e.reshape(block_rows // acc_rows, acc_rows, 128).sum(axis=0)
        out_ref[...] += psum.reshape(1, acc_rows, 128)

    if need_mask:
        blk = pl.program_id(0) * blocks_per_part + i
        is_interior = blk < num_blocks - 1

        @pl.when(is_interior)
        def _steady():
            # Hot path: no iota / compare / select.
            _accumulate(err)

        @pl.when(jnp.logical_not(is_interior))
        def _edge():
            # Valid elements of this (padded / partial / clamped-duplicate)
            # block are the first `rem` in row-major order; rem <= 0 for
            # duplicate slots past the last real block (index_map clamps them).
            rem = n - blk * (block_rows * 128)  # scalar int32 (guarded below)
            row = jax.lax.broadcasted_iota(jnp.int32, (block_rows, 128), 0)
            col = jax.lax.broadcasted_iota(jnp.int32, (block_rows, 128), 1)
            keep = (row * 128 + col) < rem
            # NOTE: garbage/pad values already went through sqrt; the select
            # does not propagate NaN/Inf, so zeroing here is safe.
            _accumulate(jnp.where(keep, err, jnp.float32(0.0)))
    else:
        _accumulate(err)


def charbonnier_loss(x, target, eps=1e-3, *, block_rows_max=None,
                     num_parts=None):
    """Pallas-TPU Charbonnier loss. x, target: same-shape arrays (any rank)."""
    assert x.shape == target.shape
    n = x.size
    assert n > 0

    x_flat = x.reshape(-1)        # free (no copy, no dtype cast)
    t_flat = target.reshape(-1)

    # Pad (with zeros) only when numel is not a multiple of one vreg (8*128);
    # padded elements are masked out inside the kernel (edge block only).
    padded = -(-n // 1024) * 1024
    if padded != n:
        # TODO(synk): this rare path still materializes one padded copy per
        # input; a fully pad-free path would need 1-D refs + in-kernel reshape.
        x_flat = jnp.pad(x_flat, (0, padded - n))
        t_flat = jnp.pad(t_flat, (0, padded - n))

    rows = padded // 128                    # always a multiple of 8
    x2 = x_flat.reshape(rows, 128)
    t2 = t_flat.reshape(rows, 128)

    vmem_limit = _vmem_limit_bytes()
    in_itemsize = max(jnp.dtype(x.dtype).itemsize,
                      jnp.dtype(target.dtype).itemsize)
    if block_rows_max is None:
        block_rows_max = _pick_block_rows(in_itemsize, vmem_limit)
    block_rows_max = max(8, (block_rows_max // 8) * 8)
    block_rows = min(block_rows_max, rows)  # multiple of 8, <= rows
    num_blocks = -(-rows // block_rows)

    # Generation-aware partitioning: only split when the chip really has more
    # than one TensorCore (v7x); on v5e/v6e the extra axis is pure overhead.
    num_cores = _num_tensorcores()
    if num_parts is None:
        num_parts = num_cores if num_blocks >= 2 else 1
    num_parts = max(1, min(int(num_parts), num_blocks))
    blocks_per_part = -(-num_blocks // num_parts)

    # Accumulator width: as many independent sublane rows as divide the block.
    acc_rows = 8
    for cand in (64, 32, 16):
        if block_rows % cand == 0:
            acc_rows = cand
            break

    need_mask = (padded != n
                 or num_blocks * block_rows != rows
                 or num_parts * blocks_per_part != num_blocks)
    if need_mask:
        # The edge-mask uses int32 flat offsets (blk * block_rows * 128).
        assert num_parts * blocks_per_part * block_rows * 128 < 2 ** 31, (
            "input too large for int32 flat indexing in the tail mask")

    def in_index_map(p, i):
        # Clamp so grid slots past the last real block still read valid memory;
        # their contribution is masked out inside the kernel.
        return (jnp.minimum(p * blocks_per_part + i, num_blocks - 1), 0)

    kernel = functools.partial(
        _charbonnier_kernel, eps=float(eps), n=n, block_rows=block_rows,
        acc_rows=acc_rows, blocks_per_part=blocks_per_part,
        num_blocks=num_blocks, need_mask=need_mask)

    # Map the partition axis onto real TensorCores when it matches hardware;
    # plain "parallel" otherwise (measured as a no-op on 1-TC chips).
    lead_sem = pltpu.PARALLEL
    if num_parts > 1 and num_parts == num_cores:
        lead_sem = pltpu.CORE_PARALLEL

    partials = pl.pallas_call(
        kernel,
        out_shape=jax.ShapeDtypeStruct((num_parts, acc_rows, 128), jnp.float32),
        grid_spec=pltpu.PrefetchScalarGridSpec(
            num_scalar_prefetch=0,
            grid=(num_parts, blocks_per_part),
            in_specs=[
                pl.BlockSpec((block_rows, 128), in_index_map),
                pl.BlockSpec((block_rows, 128), in_index_map),
            ],
            # Lane-dense output slab doubles as the per-partition accumulator
            # (revisited across the reduction axis); no in-kernel XLU reduce.
            out_specs=pl.BlockSpec((1, acc_rows, 128), lambda p, i: (p, 0, 0)),
        ),
        compiler_params=pltpu.CompilerParams(
            dimension_semantics=(lead_sem, pltpu.ARBITRARY),
            vmem_limit_bytes=vmem_limit,
        ),
    )(x2, t2)

    return jnp.sum(partials) / jnp.float32(n)


if __name__ == "__main__":
    key = jax.random.PRNGKey(0)

    def ref_loss(xx, tt, eps=1e-3):
        d = tt.astype(jnp.float32) - xx.astype(jnp.float32)
        return jnp.mean(jnp.sqrt(d * d + jnp.float32(eps * eps)))

    # (shape, dtype, block_rows_max, num_parts): exercises the aligned fast
    # path, the pad+tail-mask path, and the forced 2-partition / clamped-slot
    # path at small sizes.
    cases = [
        ((2, 4, 16, 16), jnp.float32, None, None),   # NCHW spec shape, aligned
        ((3, 3, 7, 5), jnp.float32, None, None),     # 315 elems: pad + mask
        ((1, 3, 32, 32), jnp.float32, 8, 2),         # tiny blocks, P=2, clamp
        ((2, 4, 16, 16), jnp.bfloat16, 8, None),     # bf16 multi-block
    ]
    for idx, (shape, dt, br, npart) in enumerate(cases):
        k1, k2 = jax.random.split(jax.random.fold_in(key, idx))
        x = jax.random.normal(k1, shape, dtype=jnp.float32).astype(dt)
        t = jax.random.normal(k2, shape, dtype=jnp.float32).astype(dt)
        loss = jax.block_until_ready(
            charbonnier_loss(x, t, eps=1e-3, block_rows_max=br,
                             num_parts=npart))
        ref = ref_loss(x, t, eps=1e-3)
        tol = 1e-2 if dt == jnp.bfloat16 else 1e-5
        assert jnp.allclose(loss, ref, rtol=tol, atol=tol), (shape, dt, loss, ref)

    print("KERNEL_OK")
</pallas_src>

<mosaic_0001>
module attributes {stable_mosaic.version = 11 : i64} {
  func.func @_charbonnier_kernel(%arg0: i32, %arg1: i32, %arg2: memref<16x128xf32, #tpu.memory_space<vmem>>, %arg3: memref<16x128xf32, #tpu.memory_space<vmem>>, %arg4: memref<1x16x128xf32, #tpu.memory_space<vmem>>) attributes {dimension_semantics = [#tpu.dimension_semantics<parallel>, #tpu.dimension_semantics<arbitrary>], iteration_bounds = array<i64: 1, 1>, scalar_prefetch = 0 : i64, scratch_operands = 0 : i64, tpu.core_type = #tpu.core_type<tc>, window_params = [{transform_indices = @transform_0, window_bounds = array<i64: 16, 128>}, {transform_indices = @transform_1, window_bounds = array<i64: 16, 128>}, {transform_indices = @transform_2, window_bounds = array<i64: 1, 16, 128>}]} {
    %c0_i32 = arith.constant 0 : i32
    %0 = arith.cmpi eq, %arg1, %c0_i32 : i32
    %1 = arith.extui %0 : i1 to i32
    %c0_i32_0 = arith.constant 0 : i32
    %2 = arith.cmpi ne, %1, %c0_i32_0 : i32
    scf.if %2 {
      %cst_11 = arith.constant 0.000000e+00 : f32
      %16 = vector.broadcast %cst_11 : f32 to vector<1x16x128xf32>
      %c0_12 = arith.constant 0 : index
      %c0_13 = arith.constant 0 : index
      %c0_14 = arith.constant 0 : index
      %17 = vector.load %arg4[%c0_12, %c0_13, %c0_14] : memref<1x16x128xf32, #tpu.memory_space<vmem>>, vector<1x16x128xf32>
      tpu.vector_store %arg4[%c0_12, %c0_13, %c0_14], %16 {strides = array<i32>} : memref<1x16x128xf32, #tpu.memory_space<vmem>>, vector<1x16x128xf32>,
    } else {
    }
    %c0 = arith.constant 0 : index
    %c0_1 = arith.constant 0 : index
    %3 = vector.load %arg3[%c0, %c0_1] : memref<16x128xf32, #tpu.memory_space<vmem>>, vector<16x128xf32>
    %c0_2 = arith.constant 0 : index
    %c0_3 = arith.constant 0 : index
    %4 = vector.load %arg2[%c0_2, %c0_3] : memref<16x128xf32, #tpu.memory_space<vmem>>, vector<16x128xf32>
    %5 = arith.subf %3, %4 : vector<16x128xf32>
    %6 = arith.mulf %5, %5 : vector<16x128xf32>
    %cst = arith.constant 9.99999997E-7 : f32
    %7 = vector.broadcast %cst : f32 to vector<16x128xf32>
    %8 = arith.addf %6, %7 : vector<16x128xf32>
    %9 = math.sqrt %8 : vector<16x128xf32>
    %10 = vector.shape_cast %9 : vector<16x128xf32> to vector<1x16x128xf32>
    %cst_4 = arith.constant dense<0.000000e+00> : vector<16x128xf32>
    %11 = vector.multi_reduction <add>, %10, %cst_4 [0] : vector<1x16x128xf32> to vector<16x128xf32>
    %c0_5 = arith.constant 0 : index
    %c0_6 = arith.constant 0 : index
    %c0_7 = arith.constant 0 : index
    %12 = vector.load %arg4[%c0_5, %c0_6, %c0_7] : memref<1x16x128xf32, #tpu.memory_space<vmem>>, vector<1x16x128xf32>
    %13 = vector.shape_cast %11 : vector<16x128xf32> to vector<1x16x128xf32>
    %14 = arith.addf %12, %13 : vector<1x16x128xf32>
    %c0_8 = arith.constant 0 : index
    %c0_9 = arith.constant 0 : index
    %c0_10 = arith.constant 0 : index
    %15 = vector.load %arg4[%c0_8, %c0_9, %c0_10] : memref<1x16x128xf32, #tpu.memory_space<vmem>>, vector<1x16x128xf32>
    tpu.vector_store %arg4[%c0_8, %c0_9, %c0_10], %14 {strides = array<i32>} : memref<1x16x128xf32, #tpu.memory_space<vmem>>, vector<1x16x128xf32>,
    return
  }
  func.func @transform_0(%arg0: i32, %arg1: i32) -> (i32, i32) {
    %c1_i32 = arith.constant 1 : i32
    %0 = arith.muli %arg0, %c1_i32 : i32
    %1 = arith.addi %0, %arg1 : i32
    %c0_i32 = arith.constant 0 : i32
    %2 = arith.minsi %1, %c0_i32 : i32
    %c0_i32_0 = arith.constant 0 : i32
    %c0_i32_1 = arith.constant 0 : i32
    return %2, %c0_i32_0 : i32, i32
  }
  func.func @transform_1(%arg0: i32, %arg1: i32) -> (i32, i32) {
    %c1_i32 = arith.constant 1 : i32
    %0 = arith.muli %arg0, %c1_i32 : i32
    %1 = arith.addi %0, %arg1 : i32
    %c0_i32 = arith.constant 0 : i32
    %2 = arith.minsi %1, %c0_i32 : i32
    %c0_i32_0 = arith.constant 0 : i32
    %c0_i32_1 = arith.constant 0 : i32
    return %2, %c0_i32_0 : i32, i32
  }
  func.func @transform_2(%arg0: i32, %arg1: i32) -> (i32, i32, i32) {
    %c0_i32 = arith.constant 0 : i32
    %c0_i32_0 = arith.constant 0 : i32
    %c0_i32_1 = arith.constant 0 : i32
    return %arg0, %c0_i32, %c0_i32_0 : i32, i32, i32
  }
}

</mosaic_0001>

<llo_original>
// kernel: tpu_custom_call.1
$region0: #{tpu_custom_call.1}
  #allocation0 [shape = 'u32[]', space=smem, size = 0x4, offset = 0x4, fixed_abs, tag = 'smem constant byte address 0x4 - core index']
  #allocation1 [shape = 'u32[144,128]{1,0:T(1,128)}', space=vmem, size = 0x12000, scoped, tag = 'internal scratch']
  %s0 = inlined_call_operand.hbm [shape: f32[16,128], index: 0, kind: input, shape index: {}]
  %s1 = inlined_call_operand.hbm [shape: f32[16,128], index: 1, kind: input, shape index: {}]
  %s2 = inlined_call_operand.hbm [shape: f32[1,16,128], index: 2, kind: output, shape index: {}]
  %s3 = sld [smem:[#allocation0]]
  $region30: #{tpu_custom_call.1} parent=0
    _
  %s5 = ssub.s32 1, %s3
  %s6 = scalar_select 0, %s5, %s3
  $region1: #{tpu_custom_call.1} parent=0
    #allocation2 [shape = 'u8[8192]{0}', space=vmem, size = 0x2000, scoped, tag = 'input window, operand 0, single buffered']
    #allocation3 [shape = 's32[1]{0}', space=sflag, size = 0x4, scoped, tag = 'scoped memory for tpu_custom_call.1']
    #allocation4 [shape = 's32[1]{0}', space=sflag, size = 0x4, scoped, tag = 'scoped memory for tpu_custom_call.1']
    #allocation5 [shape = 'u8[8192]{0}', space=vmem, size = 0x2000, scoped, tag = 'input window, operand 1, single buffered']
    #allocation6 [shape = 's32[1]{0}', space=sflag, size = 0x4, scoped, tag = 'scoped memory for tpu_custom_call.1']
    #allocation7 [shape = 'u8[8192]{0}', space=vmem, size = 0x2000, scoped, tag = 'output window, operand 0, single buffered']
    %7 = vsyncpa [#allocation3], 0
    %8 = vsyncpa [#allocation6], 0
    %9 = vsyncpa [#allocation4], 0
    // Predicated region
    $region2: #{tpu_custom_call.1} parent=1 // pred_check
      _
    $region3: #{tpu_custom_call.1} parent=1 // pred_check_branch
      %11 = sbr.rel (0) target = $region5
    $region4: #{tpu_custom_call.1} parent=1 // pred_region
      %s12 = sadd.s32 0, 0
      %p13 = scmp.lt.s32.totalorder %s12, 0
      %s14 = scalar_select %p13, %s12, 0
      %s15 = smul.u32 2, %s14
      %s17 = ssub.s32 256, 256
      %18 = vsyncadd [#allocation3], %s17
      %s19 = smul.addr %s15, 128
      %s20 = scalar_lea.hbm %s0, %s19
      %s21 = sshll.u32 [#allocation2], 4
      %s22 = int_to_ptr.vmem [resolvable:$true] %s21
      %27 = dma.hbm_to_vmem [thread:$0]  %s20, 256, %s22, [#allocation3], 128, 128, 8
    $region5: #{tpu_custom_call.1} parent=1 // pred_fallthru
      _
    // Predicated region
    $region6: #{tpu_custom_call.1} parent=1 // pred_check
      _
    $region7: #{tpu_custom_call.1} parent=1 // pred_check_branch
      %29 = sbr.rel (0) target = $region9
    $region8: #{tpu_custom_call.1} parent=1 // pred_region
      %s30 = sadd.s32 0, 0
      %p31 = scmp.lt.s32.totalorder %s30, 0
      %s32 = scalar_select %p31, %s30, 0
      %s33 = smul.u32 2, %s32
      %s35 = ssub.s32 256, 256
      %36 = vsyncadd [#allocation6], %s35
      %s37 = smul.addr %s33, 128
      %s38 = scalar_lea.hbm %s1, %s37
      %s39 = sshll.u32 [#allocation5], 4
      %s40 = int_to_ptr.vmem [resolvable:$true] %s39
      %45 = dma.hbm_to_vmem [thread:$0]  %s38, 256, %s40, [#allocation6], 128, 128, 8
    $region9: #{tpu_custom_call.1} parent=1 // pred_fallthru
      _
    // Predicated region
    $region10: #{tpu_custom_call.1} parent=1 // pred_check
      _
    $region11: #{tpu_custom_call.1} parent=1 // pred_check_branch
      %47 = sbr.rel (0) target = $region13
    $region12: #{tpu_custom_call.1} parent=1 // pred_region
      %48 = dma.done [#allocation3], 256
    $region13: #{tpu_custom_call.1} parent=1 // pred_fallthru
      _
    // Predicated region
    $region14: #{tpu_custom_call.1} parent=1 // pred_check
      _
    $region15: #{tpu_custom_call.1} parent=1 // pred_check_branch
      %50 = sbr.rel (0) target = $region17
    $region16: #{tpu_custom_call.1} parent=1 // pred_region
      %51 = dma.done [#allocation6], 256
    $region17: #{tpu_custom_call.1} parent=1 // pred_fallthru
      _
    %s52 = sadd.s32 0, 0
    %p53 = scmp.lt.s32.totalorder %s52, 0
    %s54 = scalar_select %p53, %s52, 0
    %s55 = smul.u32 2, %s54
    %s56 = sadd.s32 0, 0
    %p57 = scmp.lt.s32.totalorder %s56, 0
    %s58 = scalar_select %p57, %s56, 0
    %s59 = smul.u32 2, %s58
    %p60 = scmp.eq.s32.totalorder 0, 0
    // Predicated region
    $region18: #{tpu_custom_call.1} parent=1 // pred_check
      %p61 = pneg %p60
    $region19: #{tpu_custom_call.1} parent=1 // pred_check_branch
      %63 = sbr.rel (%p61) target = $region21
    $region20: #{tpu_custom_call.1} parent=1 // pred_region
      %64 = vst [vmem:[#allocation7] sm:$0xff] 0.0
      %65 = vst [vmem:[#allocation7 + $0x8] sm:$0xff] 0.0
    $region21: #{tpu_custom_call.1} parent=1 // pred_fallthru
      _
    %v66 = vld [vmem:[#allocation5] sm:$0xff]
    %v67 = vld [vmem:[#allocation5 + $0x8] sm:$0xff]
    %v68 = vld [vmem:[#allocation2] sm:$0xff]
    %v69 = vld [vmem:[#allocation2 + $0x8] sm:$0xff]
    %v70 = vsub.f32 %v66, %v68
    %v71 = vsub.f32 %v67, %v69
    %v72 = vmul.f32 %v70, %v70
    %v73 = vmul.f32 %v71, %v71
    %v74 = vadd.f32 %v72, 1e-06
    %v75 = vadd.f32 %v73, 1e-06
    %v76 = vrsqrt.pop %v74
    %v77 = vmul.f32 %v74, %v76
    %vm78 = vcmp.eq.f32.partialorder %v74, inf
    %v79 = vsel %vm78, %v74, %v77
    %vm80 = vcmp.eq.f32.partialorder %v74, 0.0
    %v81 = vand.u32 %v74, 2147483648
    %v82 = vsel %vm80, %v81, %v79
    %v83 = vrsqrt.pop %v75
    %v84 = vmul.f32 %v75, %v83
    %vm85 = vcmp.eq.f32.partialorder %v75, inf
    %v86 = vsel %vm85, %v75, %v84
    %vm87 = vcmp.eq.f32.partialorder %v75, 0.0
    %v88 = vand.u32 %v75, 2147483648
    %v89 = vsel %vm87, %v88, %v86
    %v90 = vadd.f32 %v82, 0.0
    %v91 = vadd.f32 %v89, 0.0
    %v92 = vld [vmem:[#allocation7] sm:$0xff]
    %v93 = vld [vmem:[#allocation7 + $0x8] sm:$0xff]
    %v94 = vadd.f32 %v92, %v90
    %v95 = vadd.f32 %v93, %v91
    %96 = vst [vmem:[#allocation7] sm:$0xff] %v94
    %97 = vst [vmem:[#allocation7 + $0x8] sm:$0xff] %v95
    // Predicated region
    $region22: #{tpu_custom_call.1} parent=1 // pred_check
      _
    $region23: #{tpu_custom_call.1} parent=1 // pred_check_branch
      %99 = sbr.rel (0) target = $region25
    $region24: #{tpu_custom_call.1} parent=1 // pred_region
      %s101 = ssub.s32 256, 256
      %102 = vsyncadd [#allocation4], %s101
      %s103 = sshll.u32 [#allocation7], 4
      %s104 = int_to_ptr.vmem [resolvable:$true] %s103
      %109 = dma.vmem_to_hbm [thread:$0]  %s104, 256, %s2, [#allocation4], 128, 128, 8
    $region25: #{tpu_custom_call.1} parent=1 // pred_fallthru
      _
    // Predicated region
    $region26: #{tpu_custom_call.1} parent=1 // pred_check
      _
    $region27: #{tpu_custom_call.1} parent=1 // pred_check_branch
      %111 = sbr.rel (0) target = $region29
    $region28: #{tpu_custom_call.1} parent=1 // pred_region
      %112 = dma.done [#allocation4], 256
    $region29: #{tpu_custom_call.1} parent=1 // pred_fallthru
      _
    %113 = vsyncpa [#allocation3], 1
    %114 = vsyncpa [#allocation6], 1
    %115 = vsyncpa [#allocation4], 1

</llo_original>
